<compile_context>
chip_gen: v7x
topology: tpu7x:2x2x1
jax: 0.10.0
libtpu: 0.0.40
codegen_flags: <defaults>
</compile_context>

<pallas_src>
import functools
import math

import jax
import jax.numpy as jnp
from jax import lax
from jax.experimental import pallas as pl
from jax.experimental.pallas import tpu as pltpu

_SQRT_HALF = 1.0 / math.sqrt(2.0)


def _gelu(h, approximate):
    if approximate:
        # tanh-form GELU: the transcendental lands on the EUP slot (VALU stays free on v6e/v7x).
        return jax.nn.gelu(h, approximate=True)
    # Exact erf-based GELU: matches torch.nn.GELU() default semantics.
    return 0.5 * h * (1.0 + lax.erf(h * _SQRT_HALF))


# ---------------------------------------------------------------------------
# Kernels
# ---------------------------------------------------------------------------
def _mlp_kernel_fused(x_ref, w1_ref, b1_ref, w2_ref, b2_ref, o_ref, *, approximate_gelu):
    """Weight-resident path: full hidden dim per step, 1-D row grid.

    w1/w2/b1/b2 block indices are constant across the grid, so Pallas fetches them
    once for the whole kernel; no reduction accumulator is needed.
    """
    h = jnp.dot(x_ref[...], w1_ref[...], preferred_element_type=jnp.float32)
    h = h + b1_ref[...].astype(jnp.float32)
    h = _gelu(h, approximate_gelu)
    out = jnp.dot(h.astype(w2_ref.dtype), w2_ref[...], preferred_element_type=jnp.float32)
    # Dropout(p=0.0) is the identity.
    o_ref[...] = (out + b2_ref[...].astype(jnp.float32)).astype(o_ref.dtype)


def _mlp_kernel_tiled(x_ref, w1_ref, b1_ref, w2_ref, b2_ref, o_ref, acc_ref, *, approximate_gelu):
    """Hidden-tiled fallback: grid (row_tiles, hidden_tiles), f32 accumulator over hidden."""
    h_idx = pl.program_id(1)

    @pl.when(h_idx == 0)
    def _():
        acc_ref[...] = jnp.zeros_like(acc_ref)

    h = jnp.dot(x_ref[...], w1_ref[...], preferred_element_type=jnp.float32)
    h = h + b1_ref[...].astype(jnp.float32)
    h = _gelu(h, approximate_gelu)
    acc_ref[...] += jnp.dot(h.astype(w2_ref.dtype), w2_ref[...],
                            preferred_element_type=jnp.float32)

    @pl.when(h_idx == pl.num_programs(1) - 1)
    def _():
        # Dropout(p=0.0) is the identity.
        o_ref[...] = (acc_ref[...] + b2_ref[...].astype(jnp.float32)).astype(o_ref.dtype)


# ---------------------------------------------------------------------------
# Tiling / VMEM heuristics
# ---------------------------------------------------------------------------
def _round_up(x, m):
    return (x + m - 1) // m * m


def _cdiv(a, b):
    return (a + b - 1) // b


def _vmem_capacity_bytes():
    try:
        cap = getattr(pltpu.get_tpu_info(), "vmem_capacity_bytes", None)
        if cap:
            return int(cap)
    except Exception:
        pass
    return 64 * 1024 * 1024  # conservative default (v7x per-TC size)


def _fused_vmem_estimate(tm, in_dim, hidden, out_dim, xb, wb):
    # Double-buffered blocks + generous f32 intermediate allowance.
    blocks = 2 * (tm * in_dim * xb + in_dim * hidden * wb + hidden * out_dim * wb
                  + tm * out_dim * xb + hidden * 4 + out_dim * 4)
    temps = 2 * tm * hidden * 4 + 2 * tm * out_dim * 4
    return blocks + temps


def _tiled_vmem_estimate(tm, th, in_dim, hidden, out_dim, xb, wb):
    blocks = 2 * (tm * in_dim * xb + in_dim * th * wb + th * out_dim * wb
                  + tm * out_dim * xb + th * 4 + out_dim * 4)
    temps = 2 * tm * th * 4 + tm * out_dim * 4
    acc = tm * out_dim * 4
    return blocks + temps + acc


def _row_tile_candidates(n):
    """Largest-first row tiles, multiples of 256 (MXU granule); when n is large enough,
    cap the tile so the 'parallel' axis has >=2 steps (feeds both v7x TCs / megacore)."""
    if n <= 256:
        return [_round_up(max(n, 1), 16)]
    top = min(2048, max(256, _round_up(_cdiv(n, 2), 256)))
    cands = []
    t = top
    while t >= 256:
        cands.append(t)
        t //= 2
    return cands


def _hidden_tile_candidates(hidden):
    """Divisors of hidden that are multiples of 128 (lane-tileable), largest-first; else full."""
    if hidden % 128 != 0 or hidden <= 1024:
        return [hidden]
    cands = [th for th in range(1024, 127, -128) if hidden % th == 0]
    return cands or [hidden]


def _choose_config(n, in_dim, hidden, out_dim, x_dtype, w_dtype, vmem_cap):
    xb = jnp.dtype(x_dtype).itemsize
    wb = jnp.dtype(w_dtype).itemsize
    budget = int(vmem_cap * 0.6)  # headroom for compiler scratch / spills
    tms = _row_tile_candidates(n)

    # Prefer the weight-resident variant (weights streamed exactly once).
    for tm in tms:
        if _fused_vmem_estimate(tm, in_dim, hidden, out_dim, xb, wb) <= budget:
            return tm, hidden, True

    # Otherwise tile the hidden (reduction) dimension.
    for tm in tms:
        for th in _hidden_tile_candidates(hidden):
            if _tiled_vmem_estimate(tm, th, in_dim, hidden, out_dim, xb, wb) <= budget:
                return tm, th, False

    # Last resort: smallest candidates; rely on vmem_limit_bytes.
    return tms[-1], _hidden_tile_candidates(hidden)[-1], False


# ---------------------------------------------------------------------------
# Wrapper
# ---------------------------------------------------------------------------
@functools.partial(jax.jit, static_argnames=("tm", "th", "approximate_gelu"))
def mlp_pallas(x, w1, b1, w2, b2, *, tm=None, th=None, approximate_gelu=False):
    """x: [batch, seq, in_dim] -> [batch, seq, out_dim]."""
    batch, seq, in_dim = x.shape
    hidden = w1.shape[1]
    out_dim = w2.shape[1]
    n = batch * seq

    vmem_cap = _vmem_capacity_bytes()
    auto_tm, auto_th, _ = _choose_config(n, in_dim, hidden, out_dim, x.dtype, w1.dtype, vmem_cap)
    if tm is None:
        tm = auto_tm
    if th is None:
        th = auto_th
    assert tm % 8 == 0, "row tile must be a multiple of 8 (sublane granule)"
    fused = (th == hidden)
    if not fused:
        assert hidden % th == 0, "hidden tile must divide the hidden dim"

    x2d = x.reshape(n, in_dim)
    b1_2d = b1.reshape(1, hidden)
    b2_2d = b2.reshape(1, out_dim)

    row_tiles = _cdiv(n, tm)

    # Cost estimate for XLA's scheduler around the custom call.
    xb = jnp.dtype(x.dtype).itemsize
    wb = jnp.dtype(w1.dtype).itemsize
    weight_bytes = (in_dim * hidden + hidden * out_dim) * wb
    cost = pl.CostEstimate(
        flops=2 * n * in_dim * hidden + 2 * n * hidden * out_dim,
        transcendentals=n * hidden,
        bytes_accessed=(n * in_dim * xb + n * out_dim * xb
                        + weight_bytes * (1 if fused else row_tiles)
                        + (hidden + out_dim) * 4),
    )

    # Generation-aware VMEM limit (v5e/v6e: ~108 MiB of 128; v7x: ~54 MiB of 64).
    vmem_limit = min(vmem_cap, max(32 * 1024 * 1024, int(vmem_cap * 0.85)))

    if fused:
        kernel = functools.partial(_mlp_kernel_fused, approximate_gelu=approximate_gelu)
        out2d = pl.pallas_call(
            kernel,
            out_shape=jax.ShapeDtypeStruct((n, out_dim), x.dtype),
            grid_spec=pltpu.PrefetchScalarGridSpec(
                num_scalar_prefetch=0,
                grid=(row_tiles,),
                in_specs=[
                    pl.BlockSpec((tm, in_dim), lambda i: (i, 0)),        # x row tile
                    pl.BlockSpec((in_dim, hidden), lambda i: (0, 0)),    # w1 (resident)
                    pl.BlockSpec((1, hidden), lambda i: (0, 0)),         # b1 (resident)
                    pl.BlockSpec((hidden, out_dim), lambda i: (0, 0)),   # w2 (resident)
                    pl.BlockSpec((1, out_dim), lambda i: (0, 0)),        # b2 (resident)
                ],
                out_specs=pl.BlockSpec((tm, out_dim), lambda i: (i, 0)),
            ),
            compiler_params=pltpu.CompilerParams(
                dimension_semantics=("parallel",),
                vmem_limit_bytes=vmem_limit,
            ),
            cost_estimate=cost,
        )(x2d, w1, b1_2d, w2, b2_2d)
    else:
        kernel = functools.partial(_mlp_kernel_tiled, approximate_gelu=approximate_gelu)
        out2d = pl.pallas_call(
            kernel,
            out_shape=jax.ShapeDtypeStruct((n, out_dim), x.dtype),
            grid_spec=pltpu.PrefetchScalarGridSpec(
                num_scalar_prefetch=0,
                grid=(row_tiles, hidden // th),
                in_specs=[
                    pl.BlockSpec((tm, in_dim), lambda i, h: (i, 0)),     # x row tile
                    pl.BlockSpec((in_dim, th), lambda i, h: (0, h)),     # w1 column slice
                    pl.BlockSpec((1, th), lambda i, h: (0, h)),          # b1 slice
                    pl.BlockSpec((th, out_dim), lambda i, h: (h, 0)),    # w2 row slice
                    pl.BlockSpec((1, out_dim), lambda i, h: (0, 0)),     # b2 (constant)
                ],
                out_specs=pl.BlockSpec((tm, out_dim), lambda i, h: (i, 0)),
                scratch_shapes=[pltpu.VMEM((tm, out_dim), jnp.float32)],  # f32 accumulator
            ),
            compiler_params=pltpu.CompilerParams(
                dimension_semantics=("parallel", "arbitrary"),
                vmem_limit_bytes=vmem_limit,
            ),
            cost_estimate=cost,
        )(x2d, w1, b1_2d, w2, b2_2d)

    return out2d.reshape(batch, seq, out_dim)


def _reference_mlp(x, w1, b1, w2, b2):
    h = jnp.einsum("bsi,ih->bsh", x, w1) + b1
    h = 0.5 * h * (1.0 + lax.erf(h / jnp.sqrt(2.0)))
    return jnp.einsum("bsh,ho->bso", h, w2) + b2


if __name__ == "__main__":
    # Small ViT-like shapes: batch=2, seq=8, in_dim=16, hidden=32, out_dim=16
    batch, seq, in_dim, hidden_dim, out_dim = 2, 8, 16, 32, 16

    key = jax.random.PRNGKey(0)
    kx, kw1, kb1, kw2, kb2 = jax.random.split(key, 5)

    x = jax.random.normal(kx, (batch, seq, in_dim), dtype=jnp.float32)

    # Deterministic parameter init (uniform, nn.Linear-style bounds)
    lim1 = 1.0 / math.sqrt(in_dim)
    lim2 = 1.0 / math.sqrt(hidden_dim)
    w1 = jax.random.uniform(kw1, (in_dim, hidden_dim), jnp.float32, -lim1, lim1)
    b1 = jax.random.uniform(kb1, (hidden_dim,), jnp.float32, -lim1, lim1)
    w2 = jax.random.uniform(kw2, (hidden_dim, out_dim), jnp.float32, -lim2, lim2)
    b2 = jax.random.uniform(kb2, (out_dim,), jnp.float32, -lim2, lim2)

    out = mlp_pallas(x, w1, b1, w2, b2)
    out = jax.block_until_ready(out)

    ref = _reference_mlp(x, w1, b1, w2, b2)
    assert out.shape == (batch, seq, out_dim)
    assert jnp.allclose(out, ref, atol=1e-5, rtol=1e-5), "mismatch vs reference"

    # Exercise the hidden-tiled fallback path as well (th < hidden) for coverage.
    out_tiled = jax.block_until_ready(mlp_pallas(x, w1, b1, w2, b2, th=hidden_dim // 2))
    assert jnp.allclose(out_tiled, ref, atol=1e-5, rtol=1e-5), "tiled-path mismatch vs reference"

    # TODO(synk): dropout with p > 0 (training mode) would need pltpu.prng_*; p=0.0 is identity.
    print("KERNEL_OK")
</pallas_src>

<mosaic_0001>
module attributes {stable_mosaic.version = 11 : i64} {
  func.func @_mlp_kernel_fused(%arg0: i32, %arg1: memref<16x16xf32, #tpu.memory_space<vmem>>, %arg2: memref<16x32xf32, #tpu.memory_space<vmem>>, %arg3: memref<1x32xf32, #tpu.memory_space<vmem>>, %arg4: memref<32x16xf32, #tpu.memory_space<vmem>>, %arg5: memref<1x16xf32, #tpu.memory_space<vmem>>, %arg6: memref<16x16xf32, #tpu.memory_space<vmem>>) attributes {dimension_semantics = [#tpu.dimension_semantics<parallel>], iteration_bounds = array<i64: 1>, scalar_prefetch = 0 : i64, scratch_operands = 0 : i64, tpu.core_type = #tpu.core_type<tc>, window_params = [{transform_indices = @transform_0, window_bounds = array<i64: 16, 16>}, {pipeline_mode = #tpu.pipeline_mode<synchronous>, transform_indices = @transform_1, window_bounds = array<i64: 16, 32>}, {pipeline_mode = #tpu.pipeline_mode<synchronous>, transform_indices = @transform_2, window_bounds = array<i64: 1, 32>}, {pipeline_mode = #tpu.pipeline_mode<synchronous>, transform_indices = @transform_3, window_bounds = array<i64: 32, 16>}, {pipeline_mode = #tpu.pipeline_mode<synchronous>, transform_indices = @transform_4, window_bounds = array<i64: 1, 16>}, {transform_indices = @transform_5, window_bounds = array<i64: 16, 16>}]} {
    %c0 = arith.constant 0 : index
    %c0_0 = arith.constant 0 : index
    %0 = vector.load %arg1[%c0, %c0_0] : memref<16x16xf32, #tpu.memory_space<vmem>>, vector<16x16xf32>
    %c0_1 = arith.constant 0 : index
    %c0_2 = arith.constant 0 : index
    %1 = vector.load %arg2[%c0_1, %c0_2] : memref<16x32xf32, #tpu.memory_space<vmem>>, vector<16x32xf32>
    %cst = arith.constant dense<0.000000e+00> : vector<16x32xf32>
    %2 = tpu.matmul %0, %1, %cst {dimension_numbers = #tpu.dot_dimension_numbers<[1], [0], [0], [1], [0, 0, 1, 1], [], []>} : vector<16x16xf32>, vector<16x32xf32>, vector<16x32xf32> -> vector<16x32xf32>
    %c0_3 = arith.constant 0 : index
    %c0_4 = arith.constant 0 : index
    %3 = vector.load %arg3[%c0_3, %c0_4] : memref<1x32xf32, #tpu.memory_space<vmem>>, vector<1x32xf32>
    %4 = vector.broadcast %3 : vector<1x32xf32> to vector<16x32xf32>
    %5 = arith.addf %2, %4 : vector<16x32xf32>
    %cst_5 = arith.constant 5.000000e-01 : f32
    %6 = vector.broadcast %cst_5 : f32 to vector<16x32xf32>
    %7 = arith.mulf %6, %5 : vector<16x32xf32>
    %cst_6 = arith.constant 0.707106769 : f32
    %8 = vector.broadcast %cst_6 : f32 to vector<16x32xf32>
    %9 = arith.mulf %5, %8 : vector<16x32xf32>
    %10 = math.erf %9 : vector<16x32xf32>
    %cst_7 = arith.constant 1.000000e+00 : f32
    %11 = vector.broadcast %cst_7 : f32 to vector<16x32xf32>
    %12 = arith.addf %11, %10 : vector<16x32xf32>
    %13 = arith.mulf %7, %12 : vector<16x32xf32>
    %c0_8 = arith.constant 0 : index
    %c0_9 = arith.constant 0 : index
    %14 = vector.load %arg4[%c0_8, %c0_9] : memref<32x16xf32, #tpu.memory_space<vmem>>, vector<32x16xf32>
    %cst_10 = arith.constant dense<0.000000e+00> : vector<16x16xf32>
    %15 = tpu.matmul %13, %14, %cst_10 {dimension_numbers = #tpu.dot_dimension_numbers<[1], [0], [0], [1], [0, 0, 1, 1], [], []>} : vector<16x32xf32>, vector<32x16xf32>, vector<16x16xf32> -> vector<16x16xf32>
    %c0_11 = arith.constant 0 : index
    %c0_12 = arith.constant 0 : index
    %16 = vector.load %arg5[%c0_11, %c0_12] : memref<1x16xf32, #tpu.memory_space<vmem>>, vector<1x16xf32>
    %17 = vector.broadcast %16 : vector<1x16xf32> to vector<16x16xf32>
    %18 = arith.addf %15, %17 : vector<16x16xf32>
    %c0_13 = arith.constant 0 : index
    %c0_14 = arith.constant 0 : index
    %19 = vector.load %arg6[%c0_13, %c0_14] : memref<16x16xf32, #tpu.memory_space<vmem>>, vector<16x16xf32>
    tpu.vector_store %arg6[%c0_13, %c0_14], %18 {strides = array<i32>} : memref<16x16xf32, #tpu.memory_space<vmem>>, vector<16x16xf32>,
    return
  }
  func.func @transform_0(%arg0: i32) -> (i32, i32) {
    %c0_i32 = arith.constant 0 : i32
    %c0_i32_0 = arith.constant 0 : i32
    return %arg0, %c0_i32 : i32, i32
  }
  func.func @transform_1(%arg0: i32) -> (i32, i32) {
    %c0_i32 = arith.constant 0 : i32
    %c0_i32_0 = arith.constant 0 : i32
    %c0_i32_1 = arith.constant 0 : i32
    return %c0_i32, %c0_i32_0 : i32, i32
  }
  func.func @transform_2(%arg0: i32) -> (i32, i32) {
    %c0_i32 = arith.constant 0 : i32
    %c0_i32_0 = arith.constant 0 : i32
    %c0_i32_1 = arith.constant 0 : i32
    return %c0_i32, %c0_i32_0 : i32, i32
  }
  func.func @transform_3(%arg0: i32) -> (i32, i32) {
    %c0_i32 = arith.constant 0 : i32
    %c0_i32_0 = arith.constant 0 : i32
    %c0_i32_1 = arith.constant 0 : i32
    return %c0_i32, %c0_i32_0 : i32, i32
  }
  func.func @transform_4(%arg0: i32) -> (i32, i32) {
    %c0_i32 = arith.constant 0 : i32
    %c0_i32_0 = arith.constant 0 : i32
    %c0_i32_1 = arith.constant 0 : i32
    return %c0_i32, %c0_i32_0 : i32, i32
  }
  func.func @transform_5(%arg0: i32) -> (i32, i32) {
    %c0_i32 = arith.constant 0 : i32
    %c0_i32_0 = arith.constant 0 : i32
    return %arg0, %c0_i32 : i32, i32
  }
}

</mosaic_0001>

<llo_original>
// kernel: mlp_pallas.1
$region0: #{mlp_pallas.1}
  #allocation0 [shape = 'u32[]', space=smem, size = 0x4, offset = 0x4, fixed_abs, tag = 'smem constant byte address 0x4 - core index']
  #allocation1 [shape = 'u32[144,128]{1,0:T(1,128)}', space=vmem, size = 0x12000, scoped, tag = 'internal scratch']
  %s0 = inlined_call_operand.vmem [shape: f32[16,16], index: 0, kind: input, shape index: {}]
  %s1 = inlined_call_operand.vmem [shape: f32[16,32], index: 1, kind: input, shape index: {}]
  %s2 = inlined_call_operand.vmem [shape: f32[1,32], index: 2, kind: input, shape index: {}]
  %s3 = inlined_call_operand.vmem [shape: f32[32,16], index: 3, kind: input, shape index: {}]
  %s4 = inlined_call_operand.vmem [shape: f32[1,16], index: 4, kind: input, shape index: {}]
  %s5 = inlined_call_operand.hbm [shape: f32[16,16], index: 5, kind: output, shape index: {}]
  %s6 = sld [smem:[#allocation0]]
  $region30: #{mlp_pallas.1} parent=0
    _
  %s8 = ssub.s32 1, %s6
  %s9 = scalar_select 0, %s8, %s6
  $region1: #{mlp_pallas.1} parent=0
    #allocation2 [shape = 'u8[8192]{0}', space=vmem, size = 0x2000, scoped, tag = 'output window, operand 0, single buffered']
    #allocation3 [shape = 's32[1]{0}', space=sflag, size = 0x4, scoped, tag = 'scoped memory for mlp_pallas.1']
    %10 = vsyncpa [#allocation3], 0
    // Predicated region
    $region2: #{mlp_pallas.1} parent=1 // pred_check
      _
    $region3: #{mlp_pallas.1} parent=1 // pred_check_branch
      %12 = sbr.rel (0) target = $region5
    $region4: #{mlp_pallas.1} parent=1 // pred_region
      _
    $region5: #{mlp_pallas.1} parent=1 // pred_fallthru
      _
    // Predicated region
    $region6: #{mlp_pallas.1} parent=1 // pred_check
      _
    $region7: #{mlp_pallas.1} parent=1 // pred_check_branch
      %14 = sbr.rel (0) target = $region9
    $region8: #{mlp_pallas.1} parent=1 // pred_region
      _
    $region9: #{mlp_pallas.1} parent=1 // pred_fallthru
      _
    // Predicated region
    $region10: #{mlp_pallas.1} parent=1 // pred_check
      _
    $region11: #{mlp_pallas.1} parent=1 // pred_check_branch
      %16 = sbr.rel (0) target = $region13
    $region12: #{mlp_pallas.1} parent=1 // pred_region
      _
    $region13: #{mlp_pallas.1} parent=1 // pred_fallthru
      _
    // Predicated region
    $region14: #{mlp_pallas.1} parent=1 // pred_check
      _
    $region15: #{mlp_pallas.1} parent=1 // pred_check_branch
      %18 = sbr.rel (0) target = $region17
    $region16: #{mlp_pallas.1} parent=1 // pred_region
      _
    $region17: #{mlp_pallas.1} parent=1 // pred_fallthru
      _
    // Predicated region
    $region18: #{mlp_pallas.1} parent=1 // pred_check
      _
    $region19: #{mlp_pallas.1} parent=1 // pred_check_branch
      %20 = sbr.rel (0) target = $region21
    $region20: #{mlp_pallas.1} parent=1 // pred_region
      _
    $region21: #{mlp_pallas.1} parent=1 // pred_fallthru
      _
    %v21 = vld [vmem:[%s0] sm:$0xff]
    %v22 = vld [vmem:[%s0 + $0x8] sm:$0xff]
    %v23 = vld [vmem:[%s1] sm:$0xff]
    %v24 = vld [vmem:[%s1 + $0x8] sm:$0xff]
    %v25 = vld [vmem:[%s2] sm:$0x1]
    %v27 = vlaneseq
    %v28 = vshrl.u32 %v27, 7
    %v29 = vsub.s32 0, %v28
    %v30 = vrot.slane %v25, %v29
    %vm32 = vcmask 130048
    %v34 = vsel %vm32, %v21, 0
    %v37 = vsel %vm32, %v22, 0
    %39 = vmatprep.subr.mxu0 0.0
    %40 = vmatpush1.msra.mxu0 %v23
    %41 = vmatprep.subr.mxu0 0.0
    %42 = vmatpush1.msra.mxu0 %v24
    %43 = vmatprep.subr.mxu0 0.0
    %44 = vmatpush1.msra.mxu0 0.0
    %45 = vmatprep.subr.mxu0 0.0
    %46 = vmatpush1.msra.mxu0 0.0
    %47 = vmatprep.subr.mxu0 0.0
    %48 = vmatpush1.msra.mxu0 0.0
    %49 = vmatprep.subr.mxu0 0.0
    %50 = vmatpush1.msra.mxu0 0.0
    %51 = vmatprep.subr.mxu0 0.0
    %52 = vmatpush1.msra.mxu0 0.0
    %53 = vmatprep.subr.mxu0 0.0
    %54 = vmatpush1.msra.mxu0 0.0
    %55 = vmatprep.subr.mxu0 0.0
    %56 = vmatpush1.msra.mxu0 0.0
    %57 = vmatprep.subr.mxu0 0.0
    %58 = vmatpush1.msra.mxu0 0.0
    %59 = vmatprep.subr.mxu0 0.0
    %60 = vmatpush1.msra.mxu0 0.0
    %61 = vmatprep.subr.mxu0 0.0
    %62 = vmatpush1.msra.mxu0 0.0
    %63 = vmatprep.subr.mxu0 0.0
    %64 = vmatpush1.msra.mxu0 0.0
    %65 = vmatprep.subr.mxu0 0.0
    %66 = vmatpush1.msra.mxu0 0.0
    %67 = vmatprep.subr.mxu0 0.0
    %68 = vmatpush1.msra.mxu0 0.0
    %69 = vmatprep.subr.mxu0 0.0
    %70 = vmatpush1.msra.mxu0 0.0
    %71 = vmatprep.subr.mxu0 0.0
    %72 = vmatpush1.msra.mxu0 0.0
    %73 = vmatprep.subr.mxu0 0.0
    %74 = vmatpush1.msra.mxu0 0.0
    %75 = vmatprep.subr.mxu0 0.0
    %76 = vmatpush1.msra.mxu0 0.0
    %77 = vmatprep.subr.mxu0 0.0
    %78 = vmatpush1.msra.mxu0 0.0
    %79 = vmatprep.subr.mxu0 0.0
    %80 = vmatpush1.msra.mxu0 0.0
    %81 = vmatprep.subr.mxu0 0.0
    %82 = vmatpush1.msra.mxu0 0.0
    %83 = vmatprep.subr.mxu0 0.0
    %84 = vmatpush1.msra.mxu0 0.0
    %85 = vmatprep.subr.mxu0 0.0
    %86 = vmatpush1.msra.mxu0 0.0
    %87 = vmatprep.subr.mxu0 0.0
    %88 = vmatpush1.msra.mxu0 0.0
    %89 = vmatprep.subr.mxu0 0.0
    %90 = vmatpush1.msra.mxu0 0.0
    %91 = vmatprep.subr.mxu0 0.0
    %92 = vmatpush1.msra.mxu0 0.0
    %93 = vmatprep.subr.mxu0 0.0
    %94 = vmatpush1.msra.mxu0 0.0
    %95 = vmatprep.subr.mxu0 0.0
    %96 = vmatpush1.msra.mxu0 0.0
    %97 = vmatprep.subr.mxu0 0.0
    %98 = vmatpush1.msra.mxu0 0.0
    %99 = vmatprep.subr.mxu0 0.0
    %100 = vmatpush1.msra.mxu0 0.0
    %101 = vmatprep.subr.mxu0 0.0
    %102 = vmatpush1.msra.mxu0 0.0
    %103 = vmatprep.mubr.f32.mxu0 0.0
    %104 = vmatmul.mubr.f32.gmra.mrb[0].mxu0 %v34
    %v105 = vpop.f32.mrb[0].mxu0
    %v106 = vadd.f32 %v30, %v105
    %v107 = vpop.f32.mrb[0].mxu0
    %108 = vmatprep.mubr.f32.mxu0 0.0
    %109 = vmatmul.mubr.f32.gmra.mrb[0].mxu0 %v37
    %v110 = vpop.f32.mrb[0].mxu0
    %v111 = vadd.f32 %v30, %v110
    %v112 = vpop.f32.mrb[0].mxu0
    %113 = vdwg.mxu0
    %v114 = vmul.f32 %v106, 0.5
    %v115 = vmul.f32 %v111, 0.5
    %v116 = vmul.f32 %v106, 0.70710677
    %v117 = vmul.f32 %v111, 0.70710677
    %v118 = verf.f32.pop %v116
    %v119 = verf.f32.pop %v117
    %v120 = vadd.f32 %v118, 1.0
    %v121 = vadd.f32 %v119, 1.0
    %v122 = vmul.f32 %v114, %v120
    %v123 = vmul.f32 %v115, %v121
    %v124 = vld [vmem:[%s3] sm:$0xff]
    %v125 = vld [vmem:[%s3 + $0x8] sm:$0xff]
    %v126 = vld [vmem:[%s3 + $0x10] sm:$0xff]
    %v127 = vld [vmem:[%s3 + $0x18] sm:$0xff]
    %v128 = vld [vmem:[%s4] sm:$0x1]
    %v130 = vlaneseq
    %v131 = vshrl.u32 %v130, 7
    %v132 = vsub.s32 0, %v131
    %v133 = vrot.slane %v128, %v132
    %vm135 = vcmask 261120
    %v137 = vsel %vm135, %v122, 0
    %v140 = vsel %vm135, %v123, 0
    %142 = vmatprep.subr.mxu0 0.0
    %143 = vmatpush1.msra.mxu0 %v124
    %144 = vmatprep.subr.mxu0 0.0
    %145 = vmatpush1.msra.mxu0 %v125
    %146 = vmatprep.subr.mxu0 0.0
    %147 = vmatpush1.msra.mxu0 %v126
    %148 = vmatprep.subr.mxu0 0.0
    %149 = vmatpush1.msra.mxu0 %v127
    %150 = vmatprep.subr.mxu0 0.0
    %151 = vmatpush1.msra.mxu0 0.0
    %152 = vmatprep.subr.mxu0 0.0
    %153 = vmatpush1.msra.mxu0 0.0
    %154 = vmatprep.subr.mxu0 0.0
    %155 = vmatpush1.msra.mxu0 0.0
    %156 = vmatprep.subr.mxu0 0.0
    %157 = vmatpush1.msra.mxu0 0.0
    %158 = vmatprep.subr.mxu0 0.0
    %159 = vmatpush1.msra.mxu0 0.0
    %160 = vmatprep.subr.mxu0 0.0
    %161 = vmatpush1.msra.mxu0 0.0
    %162 = vmatprep.subr.mxu0 0.0
    %163 = vmatpush1.msra.mxu0 0.0
    %164 = vmatprep.subr.mxu0 0.0
    %165 = vmatpush1.msra.mxu0 0.0
    %166 = vmatprep.subr.mxu0 0.0
    %167 = vmatpush1.msra.mxu0 0.0
    %168 = vmatprep.subr.mxu0 0.0
    %169 = vmatpush1.msra.mxu0 0.0
    %170 = vmatprep.subr.mxu0 0.0
    %171 = vmatpush1.msra.mxu0 0.0
    %172 = vmatprep.subr.mxu0 0.0
    %173 = vmatpush1.msra.mxu0 0.0
    %174 = vmatprep.subr.mxu0 0.0
    %175 = vmatpush1.msra.mxu0 0.0
    %176 = vmatprep.subr.mxu0 0.0
    %177 = vmatpush1.msra.mxu0 0.0
    %178 = vmatprep.subr.mxu0 0.0
    %179 = vmatpush1.msra.mxu0 0.0
    %180 = vmatprep.subr.mxu0 0.0
    %181 = vmatpush1.msra.mxu0 0.0
    %182 = vmatprep.subr.mxu0 0.0
    %183 = vmatpush1.msra.mxu0 0.0
    %184 = vmatprep.subr.mxu0 0.0
    %185 = vmatpush1.msra.mxu0 0.0
    %186 = vmatprep.subr.mxu0 0.0
    %187 = vmatpush1.msra.mxu0 0.0
    %188 = vmatprep.subr.mxu0 0.0
    %189 = vmatpush1.msra.mxu0 0.0
    %190 = vmatprep.subr.mxu0 0.0
    %191 = vmatpush1.msra.mxu0 0.0
    %192 = vmatprep.subr.mxu0 0.0
    %193 = vmatpush1.msra.mxu0 0.0
    %194 = vmatprep.subr.mxu0 0.0
    %195 = vmatpush1.msra.mxu0 0.0
    %196 = vmatprep.subr.mxu0 0.0
    %197 = vmatpush1.msra.mxu0 0.0
    %198 = vmatprep.subr.mxu0 0.0
    %199 = vmatpush1.msra.mxu0 0.0
    %200 = vmatprep.subr.mxu0 0.0
    %201 = vmatpush1.msra.mxu0 0.0
    %202 = vmatprep.subr.mxu0 0.0
    %203 = vmatpush1.msra.mxu0 0.0
    %204 = vmatprep.subr.mxu0 0.0
    %205 = vmatpush1.msra.mxu0 0.0
    %206 = vmatprep.mubr.f32.mxu0 0.0
    %207 = vmatmul.mubr.f32.gmra.mrb[0].mxu0 %v137
    %v208 = vpop.f32.mrb[0].mxu0
    %v209 = vadd.f32 %v133, %v208
    %v210 = vpop.f32.mrb[0].mxu0
    %211 = vmatprep.mubr.f32.mxu0 0.0
    %212 = vmatmul.mubr.f32.gmra.mrb[0].mxu0 %v140
    %v213 = vpop.f32.mrb[0].mxu0
    %v214 = vadd.f32 %v133, %v213
    %v215 = vpop.f32.mrb[0].mxu0
    %216 = vdwg.mxu0
    %217 = vst.msk [vmem:[#allocation2] sm:$0xff] %vm32, %v209
    %218 = vst.msk [vmem:[#allocation2 + $0x8] sm:$0xff] %vm32, %v214
    // Predicated region
    $region22: #{mlp_pallas.1} parent=1 // pred_check
      _
    $region23: #{mlp_pallas.1} parent=1 // pred_check_branch
      %220 = sbr.rel (0) target = $region25
    $region24: #{mlp_pallas.1} parent=1 // pred_region
      %s222 = ssub.s32 256, 256
      %223 = vsyncadd [#allocation3], %s222
      %s224 = sshll.u32 [#allocation2], 4
      %s225 = int_to_ptr.vmem [resolvable:$true] %s224
      %230 = dma.vmem_to_hbm [thread:$0]  %s225, 256, %s5, [#allocation3], 128, 128, 8
    $region25: #{mlp_pallas.1} parent=1 // pred_fallthru
      _
    // Predicated region
    $region26: #{mlp_pallas.1} parent=1 // pred_check
      _
    $region27: #{mlp_pallas.1} parent=1 // pred_check_branch
      %232 = sbr.rel (0) target = $region29
    $region28: #{mlp_pallas.1} parent=1 // pred_region
      %233 = dma.done [#allocation3], 256
    $region29: #{mlp_pallas.1} parent=1 // pred_fallthru
      _
    %234 = vsyncpa [#allocation3], 1

</llo_original>
